<compile_context>
chip_gen: v7x
topology: tpu7x:2x2x1
jax: 0.10.0
libtpu: 0.0.40
codegen_flags: <defaults>
</compile_context>

<pallas_src>
import functools

import jax
import jax.numpy as jnp
from jax.experimental import pallas as pl
from jax.experimental.pallas import tpu as pltpu

# TODO(synk): only the default forward path (sigmoid gate, layer_norm=False,
# return_gates=False) is implemented; other configs are unused branches here.


def channel_gate_kernel(x_ref, w1t_ref, b1_ref, w2t_ref, b2_ref, o_ref):
    # x_ref: (TB, C, HW) block — a batch tile with spatial dims flattened.
    x = x_ref[...]                                            # input dtype
    x_f32 = x.astype(jnp.float32)
    # Global average pool over spatial dims (AdaptiveAvgPool2d(1)) -> (TB, C).
    pooled = jnp.mean(x_f32, axis=-1)                         # (TB, C) f32
    # fc1 (1x1 conv == matmul): (TB, C) @ (C, mid_pad) + (1, mid_pad)
    h = jnp.dot(pooled, w1t_ref[...],
                preferred_element_type=jnp.float32) + b1_ref[...]
    h = jnp.maximum(h, 0.0)                                   # ReLU
    # fc2: (TB, mid_pad) @ (mid_pad, C) + (1, C); padded rows are zero.
    g = jnp.dot(h, w2t_ref[...],
                preferred_element_type=jnp.float32) + b2_ref[...]
    g = jax.nn.sigmoid(g)                                     # gate activation
    # Channel-wise gating, broadcast over the spatial (lane) axis.
    o_ref[...] = (x_f32 * g[:, :, None]).astype(o_ref.dtype)


@functools.lru_cache(maxsize=1)
def _vmem_plan():
    """(block_budget_bytes, vmem_limit_bytes) derived from the actual chip."""
    try:
        phys = int(pltpu.get_tpu_info().vmem_capacity_bytes)
    except Exception:  # no TPU info available — be conservative (v7x: 64 MiB)
        phys = 64 * 1024 * 1024
    # Budget for the double-buffered x in/out blocks: ~30% of physical VMEM
    # (<= 40 MiB), leaving headroom for weights, biases and internal scratch.
    block_budget = min(int(phys * 0.30), 40 * 1024 * 1024)
    # Let the compiler use what the tiling assumes (+16 MiB headroom), capped
    # at physical capacity — avoids Mosaic VMEM OOM against default limits.
    vmem_limit = int(min(phys, block_budget + (16 << 20)))
    return block_budget, vmem_limit


def _pick_batch_tile(B, C, HW, itemsize, block_budget):
    """Batch tile: as large as VMEM allows, but split over >=4 grid steps."""
    # Double-buffered input + output block bytes per batch row.
    row_bytes = 2 * 2 * C * HW * itemsize
    tb_vmem = max(1, block_budget // max(row_bytes, 1))
    # Keep at least ~4 grid steps (v7x megacore sharding + DMA/compute/
    # writeback overlap), but never shrink large batches below TB=8.
    tb_grid = max(pl.cdiv(B, 4), 8 if B >= 32 else 1)
    return max(1, min(B, tb_vmem, tb_grid))


@jax.jit
def channel_gate(x, w1, b1, w2, b2):
    """x: (B, C, H, W). w1: (mid, C), b1: (mid,), w2: (C, mid), b2: (C,)."""
    B, C, H, W = x.shape
    HW = H * W
    mid = w1.shape[0]
    mid_pad = max(8, ((mid + 7) // 8) * 8)

    block_budget, vmem_limit = _vmem_plan()
    TB = _pick_batch_tile(B, C, HW, x.dtype.itemsize, block_budget)
    grid = (pl.cdiv(B, TB),)

    x_flat = x.reshape(B, C, HW)
    # Zero-pad the bottleneck dim to mid_pad; padded columns give h=relu(0)=0
    # and padded rows of w2t contribute 0, so the result is unchanged.
    w1t = jnp.zeros((C, mid_pad), jnp.float32).at[:, :mid].set(
        w1.astype(jnp.float32).T)
    b1_row = jnp.zeros((1, mid_pad), jnp.float32).at[:, :mid].set(
        b1.astype(jnp.float32)[None, :])
    w2t = jnp.zeros((mid_pad, C), jnp.float32).at[:mid, :].set(
        w2.astype(jnp.float32).T)
    b2_row = b2.astype(jnp.float32).reshape(1, C)

    cost = pl.CostEstimate(
        flops=2 * B * C * HW + 4 * B * C * mid_pad,
        transcendentals=B * C,
        bytes_accessed=2 * B * C * HW * x.dtype.itemsize
        + (2 * C * mid_pad + mid_pad + C) * 4,
    )

    out = pl.pallas_call(
        channel_gate_kernel,
        out_shape=jax.ShapeDtypeStruct((B, C, HW), x.dtype),
        grid_spec=pltpu.PrefetchScalarGridSpec(
            num_scalar_prefetch=0,
            grid=grid,
            in_specs=[
                # Batch-tiled x stream (ragged edge block handled by Pallas).
                pl.BlockSpec((TB, C, HW), lambda b: (b, 0, 0)),
                # Grid-invariant weights/biases: constant index_map -> fetched
                # once and reused across all grid steps.
                pl.BlockSpec((C, mid_pad), lambda b: (0, 0)),
                pl.BlockSpec((1, mid_pad), lambda b: (0, 0)),
                pl.BlockSpec((mid_pad, C), lambda b: (0, 0)),
                pl.BlockSpec((1, C), lambda b: (0, 0)),
            ],
            out_specs=pl.BlockSpec((TB, C, HW), lambda b: (b, 0, 0)),
            # If a v7x profile shows exposed inter-step DMA gaps, bump the x
            # in/out specs to pipeline_mode=pl.Buffered(3).
        ),
        compiler_params=pltpu.CompilerParams(
            dimension_semantics=("parallel",),
            vmem_limit_bytes=vmem_limit,
        ),
        cost_estimate=cost,
    )(x_flat, w1t, b1_row, w2t, b2_row)
    return out.reshape(B, C, H, W)


def channel_gate_ref(x, w1, b1, w2, b2):
    # Pure-JAX reference matching the PyTorch forward (default config).
    pooled = jnp.mean(x.astype(jnp.float32), axis=(2, 3))       # (B, C)
    h = jnp.maximum(pooled @ w1.T + b1, 0.0)                    # (B, mid)
    g = jax.nn.sigmoid(h @ w2.T + b2)                           # (B, C)
    return (x.astype(jnp.float32) * g[:, :, None, None]).astype(x.dtype)


if __name__ == "__main__":
    # Small shapes consistent with the module: in_channels=64, reduction=16.
    B, C, H, W = 2, 64, 16, 16
    reduction = 16
    mid = C // reduction

    key = jax.random.PRNGKey(0)
    kx, k1, k2, k3, k4 = jax.random.split(key, 5)
    x = jax.random.normal(kx, (B, C, H, W), dtype=jnp.float32)

    # Deterministic parameter init (Conv2d 1x1 weights squeezed to 2-D).
    w1 = jax.random.normal(k1, (mid, C), dtype=jnp.float32) * 0.1   # fc1 weight
    b1 = jax.random.normal(k2, (mid,), dtype=jnp.float32) * 0.1     # fc1 bias
    w2 = jax.random.normal(k3, (C, mid), dtype=jnp.float32) * 0.1   # fc2 weight
    b2 = jax.random.normal(k4, (C,), dtype=jnp.float32) * 0.1       # fc2 bias

    out = channel_gate(x, w1, b1, w2, b2)
    out = jax.block_until_ready(out)

    ref = channel_gate_ref(x, w1, b1, w2, b2)
    assert out.shape == (B, C, H, W)
    assert jnp.allclose(out, ref, atol=1e-5, rtol=1e-5)

    print("KERNEL_OK")
</pallas_src>

<mosaic_0001>
module attributes {stable_mosaic.version = 11 : i64} {
  func.func @channel_gate_kernel(%arg0: i32, %arg1: memref<1x64x256xf32, #tpu.memory_space<vmem>>, %arg2: memref<64x8xf32, #tpu.memory_space<vmem>>, %arg3: memref<1x8xf32, #tpu.memory_space<vmem>>, %arg4: memref<8x64xf32, #tpu.memory_space<vmem>>, %arg5: memref<1x64xf32, #tpu.memory_space<vmem>>, %arg6: memref<1x64x256xf32, #tpu.memory_space<vmem>>) attributes {dimension_semantics = [#tpu.dimension_semantics<parallel>], iteration_bounds = array<i64: 2>, scalar_prefetch = 0 : i64, scratch_operands = 0 : i64, tpu.core_type = #tpu.core_type<tc>, window_params = [{transform_indices = @transform_0, window_bounds = array<i64: 1, 64, 256>}, {pipeline_mode = #tpu.pipeline_mode<synchronous>, transform_indices = @transform_1, window_bounds = array<i64: 64, 8>}, {pipeline_mode = #tpu.pipeline_mode<synchronous>, transform_indices = @transform_2, window_bounds = array<i64: 1, 8>}, {pipeline_mode = #tpu.pipeline_mode<synchronous>, transform_indices = @transform_3, window_bounds = array<i64: 8, 64>}, {pipeline_mode = #tpu.pipeline_mode<synchronous>, transform_indices = @transform_4, window_bounds = array<i64: 1, 64>}, {transform_indices = @transform_5, window_bounds = array<i64: 1, 64, 256>}]} {
    %c0 = arith.constant 0 : index
    %c0_0 = arith.constant 0 : index
    %c0_1 = arith.constant 0 : index
    %0 = vector.load %arg1[%c0, %c0_0, %c0_1] : memref<1x64x256xf32, #tpu.memory_space<vmem>>, vector<1x64x256xf32>
    %cst = arith.constant dense<0.000000e+00> : vector<1x64xf32>
    %1 = vector.multi_reduction <add>, %0, %cst [2] : vector<1x64x256xf32> to vector<1x64xf32>
    %cst_2 = arith.constant 2.560000e+02 : f32
    %2 = vector.broadcast %cst_2 : f32 to vector<1x64xf32>
    %3 = arith.divf %1, %2 : vector<1x64xf32>
    %c0_3 = arith.constant 0 : index
    %c0_4 = arith.constant 0 : index
    %4 = vector.load %arg2[%c0_3, %c0_4] : memref<64x8xf32, #tpu.memory_space<vmem>>, vector<64x8xf32>
    %cst_5 = arith.constant dense<0.000000e+00> : vector<1x8xf32>
    %5 = tpu.matmul %3, %4, %cst_5 {dimension_numbers = #tpu.dot_dimension_numbers<[1], [0], [0], [1], [0, 0, 1, 1], [], []>} : vector<1x64xf32>, vector<64x8xf32>, vector<1x8xf32> -> vector<1x8xf32>
    %c0_6 = arith.constant 0 : index
    %c0_7 = arith.constant 0 : index
    %6 = vector.load %arg3[%c0_6, %c0_7] : memref<1x8xf32, #tpu.memory_space<vmem>>, vector<1x8xf32>
    %7 = arith.addf %5, %6 : vector<1x8xf32>
    %cst_8 = arith.constant 0.000000e+00 : f32
    %8 = vector.broadcast %cst_8 : f32 to vector<1x8xf32>
    %9 = arith.maximumf %7, %8 : vector<1x8xf32>
    %c0_9 = arith.constant 0 : index
    %c0_10 = arith.constant 0 : index
    %10 = vector.load %arg4[%c0_9, %c0_10] : memref<8x64xf32, #tpu.memory_space<vmem>>, vector<8x64xf32>
    %cst_11 = arith.constant dense<0.000000e+00> : vector<1x64xf32>
    %11 = tpu.matmul %9, %10, %cst_11 {dimension_numbers = #tpu.dot_dimension_numbers<[1], [0], [0], [1], [0, 0, 1, 1], [], []>} : vector<1x8xf32>, vector<8x64xf32>, vector<1x64xf32> -> vector<1x64xf32>
    %c0_12 = arith.constant 0 : index
    %c0_13 = arith.constant 0 : index
    %12 = vector.load %arg5[%c0_12, %c0_13] : memref<1x64xf32, #tpu.memory_space<vmem>>, vector<1x64xf32>
    %13 = arith.addf %11, %12 : vector<1x64xf32>
    %14 = arith.negf %13 : vector<1x64xf32>
    %15 = math.exp %14 : vector<1x64xf32>
    %cst_14 = arith.constant 1.000000e+00 : f32
    %16 = vector.broadcast %cst_14 : f32 to vector<1x64xf32>
    %17 = arith.addf %16, %15 : vector<1x64xf32>
    %18 = arith.divf %16, %17 : vector<1x64xf32>
    %19 = vector.shape_cast %18 : vector<1x64xf32> to vector<1x64x1xf32>
    %20 = vector.broadcast %19 : vector<1x64x1xf32> to vector<1x64x256xf32>
    %21 = arith.mulf %0, %20 : vector<1x64x256xf32>
    %c0_15 = arith.constant 0 : index
    %c0_16 = arith.constant 0 : index
    %c0_17 = arith.constant 0 : index
    %22 = vector.load %arg6[%c0_15, %c0_16, %c0_17] : memref<1x64x256xf32, #tpu.memory_space<vmem>>, vector<1x64x256xf32>
    tpu.vector_store %arg6[%c0_15, %c0_16, %c0_17], %21 {strides = array<i32>} : memref<1x64x256xf32, #tpu.memory_space<vmem>>, vector<1x64x256xf32>,
    return
  }
  func.func @transform_0(%arg0: i32) -> (i32, i32, i32) {
    %c0_i32 = arith.constant 0 : i32
    %c0_i32_0 = arith.constant 0 : i32
    %c0_i32_1 = arith.constant 0 : i32
    return %arg0, %c0_i32, %c0_i32_0 : i32, i32, i32
  }
  func.func @transform_1(%arg0: i32) -> (i32, i32) {
    %c0_i32 = arith.constant 0 : i32
    %c0_i32_0 = arith.constant 0 : i32
    %c0_i32_1 = arith.constant 0 : i32
    return %c0_i32, %c0_i32_0 : i32, i32
  }
  func.func @transform_2(%arg0: i32) -> (i32, i32) {
    %c0_i32 = arith.constant 0 : i32
    %c0_i32_0 = arith.constant 0 : i32
    %c0_i32_1 = arith.constant 0 : i32
    return %c0_i32, %c0_i32_0 : i32, i32
  }
  func.func @transform_3(%arg0: i32) -> (i32, i32) {
    %c0_i32 = arith.constant 0 : i32
    %c0_i32_0 = arith.constant 0 : i32
    %c0_i32_1 = arith.constant 0 : i32
    return %c0_i32, %c0_i32_0 : i32, i32
  }
  func.func @transform_4(%arg0: i32) -> (i32, i32) {
    %c0_i32 = arith.constant 0 : i32
    %c0_i32_0 = arith.constant 0 : i32
    %c0_i32_1 = arith.constant 0 : i32
    return %c0_i32, %c0_i32_0 : i32, i32
  }
  func.func @transform_5(%arg0: i32) -> (i32, i32, i32) {
    %c0_i32 = arith.constant 0 : i32
    %c0_i32_0 = arith.constant 0 : i32
    %c0_i32_1 = arith.constant 0 : i32
    return %arg0, %c0_i32, %c0_i32_0 : i32, i32, i32
  }
}

</mosaic_0001>

<llo_original>
// kernel: channel_gate.1
$region0: #{channel_gate.1}
  #allocation0 [shape = 'u32[]', space=smem, size = 0x4, offset = 0x4, fixed_abs, tag = 'smem constant byte address 0x4 - core index']
  #allocation1 [shape = 'u32[144,128]{1,0:T(1,128)}', space=vmem, size = 0x12000, scoped, tag = 'internal scratch']
  %s0 = inlined_call_operand.vmem [shape: f32[2,64,256], index: 0, kind: input, shape index: {}]
  %s1 = inlined_call_operand.vmem [shape: f32[64,8], index: 1, kind: input, shape index: {}]
  %s2 = inlined_call_operand.vmem [shape: f32[1,8], index: 2, kind: input, shape index: {}]
  %s3 = inlined_call_operand.vmem [shape: f32[8,64], index: 3, kind: input, shape index: {}]
  %s4 = inlined_call_operand.vmem [shape: f32[1,64], index: 4, kind: input, shape index: {}]
  %s5 = inlined_call_operand.vmem [shape: f32[2,64,256], index: 5, kind: output, shape index: {}]
  %s6 = sld [smem:[#allocation0]]
  $region53: #{channel_gate.1} parent=0
    _
  %s8 = ssub.s32 1, %s6
  %s9 = scalar_select 0, %s8, %s6
  loop: start=0, step=1, limit=4
  $region2: #{channel_gate.1} parent=0 // loop_pre_header
    _
  $region3: #{channel_gate.1} parent=0 // loop_header
    %s11 = sphi 0, %s15
    %p12 = scmp.ge.s32.totalorder %s11, 4
    %s21 = sphi 0, %s23
    %s24 = sphi 0, %s21
    %s25 = sphi 0, %s24
    %s41 = sphi 0, %s25
    %s45 = sphi 0, %s45
    %s47 = sphi 0, %s45
    %s48 = sphi 0, %s47
    %s62 = sphi 0, %s48
    %s66 = sphi 0, %s66
    %s68 = sphi 0, %s66
    %s69 = sphi 0, %s68
    %s83 = sphi 0, %s69
    %s87 = sphi 0, %s87
    %s89 = sphi 0, %s87
    %s90 = sphi 0, %s89
    %s104 = sphi 0, %s90
    %s108 = sphi 0, %s108
    %s110 = sphi 0, %s108
    %s111 = sphi 0, %s110
    %s125 = sphi 0, %s111
    %s131 = sphi 0, %s133
    %s134 = sphi 0, %s131
    %s135 = sphi 0, %s134
    %s151 = sphi 0, %s135
  $region4: #{channel_gate.1} parent=0 // loop_header_branch
    %14 = sbr.rel (%p12) target = $region8
  $region5: #{channel_gate.1} parent=0 // loop_body
    %s16 = ssub.s32 %s11, 1
    %s17 = ssub.s32 %s11, 2
    %s18 = sadd.s32 %s11, 1
    %s19 = ssub.s32 %s11, %s18
    %p20 = scmp.eq.s32.totalorder %s19, 0
    %s22 = sadd.s32 %s21, 1
    %s23 = scalar_select %p20, %s21, %s22
    %p26 = pneg %p20
    %p27 = scmp.eq.s32.totalorder %s11, 1
    %p28 = por %p26, %p27
    %p29 = scmp.ne.s32.totalorder %s21, %s24
    %p30 = scmp.eq.s32.totalorder %s11, 0
    %p31 = por %p29, %p30
    %p32 = scmp.ne.s32.totalorder %s21, %s24
    %p33 = scmp.eq.s32.totalorder %s16, 1
    %p34 = por %p32, %p33
    %p35 = scmp.ne.s32.totalorder %s24, %s25
    %p36 = scmp.eq.s32.totalorder %s16, 0
    %p37 = por %p35, %p36
    %p38 = scmp.ne.s32.totalorder %s24, %s25
    %p39 = scmp.eq.s32.totalorder %s17, 1
    %p40 = por %p38, %p39
    %p42 = scmp.ne.s32.totalorder %s25, %s41
    %p43 = scmp.eq.s32.totalorder %s17, 0
    %p44 = por %p42, %p43
    %s46 = sadd.s32 %s45, 1
    %p49 = scmp.eq.s32.totalorder %s11, 1
    %p50 = scmp.ne.s32.totalorder %s45, %s47
    %p51 = scmp.eq.s32.totalorder %s11, 0
    %p52 = por %p50, %p51
    %p53 = scmp.ne.s32.totalorder %s45, %s47
    %p54 = scmp.eq.s32.totalorder %s16, 1
    %p55 = por %p53, %p54
    %p56 = scmp.ne.s32.totalorder %s47, %s48
    %p57 = scmp.eq.s32.totalorder %s16, 0
    %p58 = por %p56, %p57
    %p59 = scmp.ne.s32.totalorder %s47, %s48
    %p60 = scmp.eq.s32.totalorder %s17, 1
    %p61 = por %p59, %p60
    %p63 = scmp.ne.s32.totalorder %s48, %s62
    %p64 = scmp.eq.s32.totalorder %s17, 0
    %p65 = por %p63, %p64
    %s67 = sadd.s32 %s66, 1
    %p70 = scmp.eq.s32.totalorder %s11, 1
    %p71 = scmp.ne.s32.totalorder %s66, %s68
    %p72 = scmp.eq.s32.totalorder %s11, 0
    %p73 = por %p71, %p72
    %p74 = scmp.ne.s32.totalorder %s66, %s68
    %p75 = scmp.eq.s32.totalorder %s16, 1
    %p76 = por %p74, %p75
    %p77 = scmp.ne.s32.totalorder %s68, %s69
    %p78 = scmp.eq.s32.totalorder %s16, 0
    %p79 = por %p77, %p78
    %p80 = scmp.ne.s32.totalorder %s68, %s69
    %p81 = scmp.eq.s32.totalorder %s17, 1
    %p82 = por %p80, %p81
    %p84 = scmp.ne.s32.totalorder %s69, %s83
    %p85 = scmp.eq.s32.totalorder %s17, 0
    %p86 = por %p84, %p85
    %s88 = sadd.s32 %s87, 1
    %p91 = scmp.eq.s32.totalorder %s11, 1
    %p92 = scmp.ne.s32.totalorder %s87, %s89
    %p93 = scmp.eq.s32.totalorder %s11, 0
    %p94 = por %p92, %p93
    %p95 = scmp.ne.s32.totalorder %s87, %s89
    %p96 = scmp.eq.s32.totalorder %s16, 1
    %p97 = por %p95, %p96
    %p98 = scmp.ne.s32.totalorder %s89, %s90
    %p99 = scmp.eq.s32.totalorder %s16, 0
    %p100 = por %p98, %p99
    %p101 = scmp.ne.s32.totalorder %s89, %s90
    %p102 = scmp.eq.s32.totalorder %s17, 1
    %p103 = por %p101, %p102
    %p105 = scmp.ne.s32.totalorder %s90, %s104
    %p106 = scmp.eq.s32.totalorder %s17, 0
    %p107 = por %p105, %p106
    %s109 = sadd.s32 %s108, 1
    %p112 = scmp.eq.s32.totalorder %s11, 1
    %p113 = scmp.ne.s32.totalorder %s108, %s110
    %p114 = scmp.eq.s32.totalorder %s11, 0
    %p115 = por %p113, %p114
    %p116 = scmp.ne.s32.totalorder %s108, %s110
    %p117 = scmp.eq.s32.totalorder %s16, 1
    %p118 = por %p116, %p117
    %p119 = scmp.ne.s32.totalorder %s110, %s111
    %p120 = scmp.eq.s32.totalorder %s16, 0
    %p121 = por %p119, %p120
    %p122 = scmp.ne.s32.totalorder %s110, %s111
    %p123 = scmp.eq.s32.totalorder %s17, 1
    %p124 = por %p122, %p123
    %p126 = scmp.ne.s32.totalorder %s111, %s125
    %p127 = scmp.eq.s32.totalorder %s17, 0
    %p128 = por %p126, %p127
    %s129 = ssub.s32 %s11, %s18
    %p130 = scmp.eq.s32.totalorder %s129, 0
    %s132 = sadd.s32 %s131, 1
    %s133 = scalar_select %p130, %s131, %s132
    %p136 = pneg %p130
    %p137 = scmp.eq.s32.totalorder %s11, 1
    %p138 = por %p136, %p137
    %p139 = scmp.ne.s32.totalorder %s131, %s134
    %p140 = scmp.eq.s32.totalorder %s11, 0
    %p141 = por %p139, %p140
    %p142 = scmp.ne.s32.totalorder %s131, %s134
    %p143 = scmp.eq.s32.totalorder %s16, 1
    %p144 = por %p142, %p143
    %p145 = scmp.ne.s32.totalorder %s134, %s135
    %p146 = scmp.eq.s32.totalorder %s16, 0
    %p147 = por %p145, %p146
    %p148 = scmp.ne.s32.totalorder %s134, %s135
    %p149 = scmp.eq.s32.totalorder %s17, 1
    %p150 = por %p148, %p149
    %p152 = scmp.ne.s32.totalorder %s135, %s151
    %p153 = scmp.eq.s32.totalorder %s17, 0
    %p154 = por %p152, %p153
    %p155 = scmp.le.s32.totalorder 1, %s11
    %p156 = scmp.lt.s32.totalorder %s11, 3
    %p157 = pnand %p155, %p156
    %p158 = pneg %p157
    // Predicated region
    $region9: #{channel_gate.1} parent=5 // pred_check
      _
    $region10: #{channel_gate.1} parent=5 // pred_check_branch
      %160 = sbr.rel (%p157) target = $region12
    $region11: #{channel_gate.1} parent=5 // pred_region
      %s161 = ssub.s32 %s11, 1
      // Predicated region
      $region13: #{channel_gate.1} parent=11 // pred_check
        %p162 = pneg %p58
      $region14: #{channel_gate.1} parent=11 // pred_check_branch
        %164 = sbr.rel (%p162) target = $region16
      $region15: #{channel_gate.1} parent=11 // pred_region
        _
      $region16: #{channel_gate.1} parent=11 // pred_fallthru
        _
      // Predicated region
      $region17: #{channel_gate.1} parent=11 // pred_check
        %p165 = pneg %p79
      $region18: #{channel_gate.1} parent=11 // pred_check_branch
        %167 = sbr.rel (%p165) target = $region20
      $region19: #{channel_gate.1} parent=11 // pred_region
        _
      $region20: #{channel_gate.1} parent=11 // pred_fallthru
        _
      // Predicated region
      $region21: #{channel_gate.1} parent=11 // pred_check
        %p168 = pneg %p100
      $region22: #{channel_gate.1} parent=11 // pred_check_branch
        %170 = sbr.rel (%p168) target = $region24
      $region23: #{channel_gate.1} parent=11 // pred_region
        _
      $region24: #{channel_gate.1} parent=11 // pred_fallthru
        _
      // Predicated region
      $region25: #{channel_gate.1} parent=11 // pred_check
        %p171 = pneg %p121
      $region26: #{channel_gate.1} parent=11 // pred_check_branch
        %173 = sbr.rel (%p171) target = $region28
      $region27: #{channel_gate.1} parent=11 // pred_region
        _
      $region28: #{channel_gate.1} parent=11 // pred_fallthru
        _
    $region12: #{channel_gate.1} parent=5 // pred_fallthru
      _
    %p174 = scmp.lt.s32.totalorder %s11, 2
    // Predicated region
    $region29: #{channel_gate.1} parent=5 // pred_check
      %p175 = pneg %p174
    $region30: #{channel_gate.1} parent=5 // pred_check_branch
      %177 = sbr.rel (%p175) target = $region32
    $region31: #{channel_gate.1} parent=5 // pred_region
      // Predicated region
      $region33: #{channel_gate.1} parent=31 // pred_check
        %p178 = pneg %p31
      $region34: #{channel_gate.1} parent=31 // pred_check_branch
        %180 = sbr.rel (%p178) target = $region36
      $region35: #{channel_gate.1} parent=31 // pred_region
        %p181 = scmp.lt.s32.totalorder %s11, 1
        %s182 = scalar_select %p181, %s11, 1
        %s183 = smul.addr %s182, 16
        %s184 = smul.addr %s183, 8
        %s185 = scalar_lea.vmem %s0, %s184
      $region36: #{channel_gate.1} parent=31 // pred_fallthru
        _
    $region32: #{channel_gate.1} parent=5 // pred_fallthru
      _
    %p186 = scmp.le.s32.totalorder 1, %s11
    %p187 = scmp.lt.s32.totalorder %s11, 3
    %p188 = pnand %p186, %p187
    %p189 = pneg %p188
    // Predicated region
    $region37: #{channel_gate.1} parent=5 // pred_check
      _
    $region38: #{channel_gate.1} parent=5 // pred_check_branch
      %191 = sbr.rel (%p188) target = $region40
    $region39: #{channel_gate.1} parent=5 // pred_region
      %s192 = ssub.s32 %s11, 1
      %p193 = scmp.lt.s32.totalorder %s16, 1
      %s194 = scalar_select %p193, %s16, 1
      %s195 = smul.addr %s194, 16
      %s196 = smul.addr %s195, 8
      %s197 = scalar_lea.vmem %s0, %s196
      %p198 = pneg %p37
      %p199 = pneg %p34
      %p200 = pneg %p58
      %p201 = pneg %p55
      %p202 = pneg %p79
      %p203 = pneg %p76
      %p204 = pneg %p100
      %p205 = pneg %p97
      %p206 = pneg %p121
      %p207 = pneg %p118
      %p208 = pneg %p147
      %p209 = pneg %p144
      %p210 = scmp.lt.s32.totalorder %s16, 1
      %s211 = scalar_select %p210, %s16, 1
      %s212 = smul.addr %s211, 16
      %s213 = smul.addr %s212, 8
      %s214 = scalar_lea.vmem %s5, %s213
      %p215 = scmp.lt.s32.totalorder %s16, 1
      %s216 = scalar_select %p215, %s16, 1
      %s217 = smul.addr %s216, 16
      %s218 = smul.addr %s217, 8
      %s219 = scalar_lea.vmem %s0, %s218
      %p220 = scmp.lt.s32.totalorder %s16, 1
      %s221 = scalar_select %p220, %s16, 1
      %s222 = smul.addr %s221, 16
      %s223 = smul.addr %s222, 8
      %s224 = scalar_lea.vmem %s5, %s223
      %v225 = vld [vmem:[%s219] sm:$0xff]
      %v226 = vld [vmem:[%s219 + $0x8] sm:$0xff]
      %v227 = vld [vmem:[%s219 + $0x10] sm:$0xff]
      %v228 = vld [vmem:[%s219 + $0x18] sm:$0xff]
      %v229 = vld [vmem:[%s219 + $0x20] sm:$0xff]
      %v230 = vld [vmem:[%s219 + $0x28] sm:$0xff]
      %v231 = vld [vmem:[%s219 + $0x30] sm:$0xff]
      %v232 = vld [vmem:[%s219 + $0x38] sm:$0xff]
      %v233 = vld [vmem:[%s219 + $0x40] sm:$0xff]
      %v234 = vld [vmem:[%s219 + $0x48] sm:$0xff]
      %v235 = vld [vmem:[%s219 + $0x50] sm:$0xff]
      %v236 = vld [vmem:[%s219 + $0x58] sm:$0xff]
      %v237 = vld [vmem:[%s219 + $0x60] sm:$0xff]
      %v238 = vld [vmem:[%s219 + $0x68] sm:$0xff]
      %v239 = vld [vmem:[%s219 + $0x70] sm:$0xff]
      %v240 = vld [vmem:[%s219 + $0x78] sm:$0xff]
      %v241 = vadd.f32 %v225, %v226
      %242 = vadd.xlane.f32.xlu0 %v241
      %v243 = vpop.xlane.xlu0 %242
      %v244 = vadd.f32 %v227, %v228
      %245 = vadd.xlane.f32.xlu0 %v244
      %v246 = vpop.xlane.xlu0 %245
      %v247 = vadd.f32 %v229, %v230
      %248 = vadd.xlane.f32.xlu0 %v247
      %v249 = vpop.xlane.xlu0 %248
      %v250 = vadd.f32 %v231, %v232
      %251 = vadd.xlane.f32.xlu0 %v250
      %v252 = vpop.xlane.xlu0 %251
      %v253 = vadd.f32 %v233, %v234
      %254 = vadd.xlane.f32.xlu0 %v253
      %v255 = vpop.xlane.xlu0 %254
      %v256 = vadd.f32 %v235, %v236
      %257 = vadd.xlane.f32.xlu0 %v256
      %v258 = vpop.xlane.xlu0 %257
      %v259 = vadd.f32 %v237, %v238
      %260 = vadd.xlane.f32.xlu0 %v259
      %v261 = vpop.xlane.xlu0 %260
      %v262 = vadd.f32 %v239, %v240
      %263 = vadd.xlane.f32.xlu0 %v262
      %v264 = vpop.xlane.xlu0 %263
      %v265 = vrcp.pop 256.0
      %v266 = vmul.f32 %v243, %v265
      %v267 = vmul.f32 %v246, %v265
      %v268 = vmul.f32 %v249, %v265
      %v269 = vmul.f32 %v252, %v265
      %v270 = vmul.f32 %v255, %v265
      %v271 = vmul.f32 %v258, %v265
      %v272 = vmul.f32 %v261, %v265
      %v273 = vmul.f32 %v264, %v265
      %v274 = vld [vmem:[%s1] sm:$0xff]
      %v275 = vld [vmem:[%s1 + $0x8] sm:$0xff]
      %v276 = vld [vmem:[%s1 + $0x10] sm:$0xff]
      %v277 = vld [vmem:[%s1 + $0x18] sm:$0xff]
      %v278 = vld [vmem:[%s1 + $0x20] sm:$0xff]
      %v279 = vld [vmem:[%s1 + $0x28] sm:$0xff]
      %v280 = vld [vmem:[%s1 + $0x30] sm:$0xff]
      %v281 = vld [vmem:[%s1 + $0x38] sm:$0xff]
      %v282 = vld [vmem:[%s2] sm:$0x1]
      %v291 = vlaneseq
      %v292 = vand.u32 %v291, 127
      %v293 = vlaneseq
      %v294 = vshrl.u32 %v293, 7
      %v295 = vsub.s32 %v292, %v294
      %v296 = vrot.slane %v266, %v295
      %v297 = vadd.s32 %v292, 4294967288
      %v298 = vlaneseq
      %v299 = vshrl.u32 %v298, 7
      %v300 = vsub.s32 %v297, %v299
      %v301 = vrot.slane %v267, %v300
      %vm302 = vcmask 130112
      %v303 = vsel %vm302, %v301, %v296
      %v304 = vadd.s32 %v292, 4294967280
      %v305 = vlaneseq
      %v306 = vshrl.u32 %v305, 7
      %v307 = vsub.s32 %v304, %v306
      %v308 = vrot.slane %v268, %v307
      %vm309 = vcmask 195712
      %v310 = vsel %vm309, %v308, %v303
      %v311 = vadd.s32 %v292, 4294967272
      %v312 = vlaneseq
      %v313 = vshrl.u32 %v312, 7
      %v314 = vsub.s32 %v311, %v313
      %v315 = vrot.slane %v269, %v314
      %vm316 = vcmask 261312
      %v317 = vsel %vm316, %v315, %v310
      %v318 = vadd.s32 %v292, 4294967264
      %v319 = vlaneseq
      %v320 = vshrl.u32 %v319, 7
      %v321 = vsub.s32 %v318, %v320
      %v322 = vrot.slane %v270, %v321
      %vm323 = vcmask 326912
      %v324 = vsel %vm323, %v322, %v317
      %v325 = vadd.s32 %v292, 4294967256
      %v326 = vlaneseq
      %v327 = vshrl.u32 %v326, 7
      %v328 = vsub.s32 %v325, %v327
      %v329 = vrot.slane %v271, %v328
      %vm330 = vcmask 392512
      %v331 = vsel %vm330, %v329, %v324
      %v332 = vadd.s32 %v292, 4294967248
      %v333 = vlaneseq
      %v334 = vshrl.u32 %v333, 7
      %v335 = vsub.s32 %v332, %v334
      %v336 = vrot.slane %v272, %v335
      %vm337 = vcmask 458112
      %v338 = vsel %vm337, %v336, %v331
      %v339 = vadd.s32 %v292, 4294967240
      %v340 = vlaneseq
      %v341 = vshrl.u32 %v340, 7
      %v342 = vsub.s32 %v339, %v341
      %v343 = vrot.slane %v273, %v342
      %vm344 = vcmask 523712
      %v345 = vsel %vm344, %v343, %v338
      %vm346 = vcmask 523264
      %v347 = vsel %vm346, %v345, 0
      %349 = vmatprep.subr.mxu0 0.0
      %350 = vmatpush1.msra.mxu0 %v274
      %351 = vmatprep.subr.mxu0 0.0
      %352 = vmatpush1.msra.mxu0 %v275
      %353 = vmatprep.subr.mxu0 0.0
      %354 = vmatpush1.msra.mxu0 %v276
      %355 = vmatprep.subr.mxu0 0.0
      %356 = vmatpush1.msra.mxu0 %v277
      %357 = vmatprep.subr.mxu0 0.0
      %358 = vmatpush1.msra.mxu0 %v278
      %359 = vmatprep.subr.mxu0 0.0
      %360 = vmatpush1.msra.mxu0 %v279
      %361 = vmatprep.subr.mxu0 0.0
      %362 = vmatpush1.msra.mxu0 %v280
      %363 = vmatprep.subr.mxu0 0.0
      %364 = vmatpush1.msra.mxu0 %v281
      %365 = vmatprep.subr.mxu0 0.0
      %366 = vmatpush1.msra.mxu0 0.0
      %367 = vmatprep.subr.mxu0 0.0
      %368 = vmatpush1.msra.mxu0 0.0
      %369 = vmatprep.subr.mxu0 0.0
      %370 = vmatpush1.msra.mxu0 0.0
      %371 = vmatprep.subr.mxu0 0.0
      %372 = vmatpush1.msra.mxu0 0.0
      %373 = vmatprep.subr.mxu0 0.0
      %374 = vmatpush1.msra.mxu0 0.0
      %375 = vmatprep.subr.mxu0 0.0
      %376 = vmatpush1.msra.mxu0 0.0
      %377 = vmatprep.subr.mxu0 0.0
      %378 = vmatpush1.msra.mxu0 0.0
      %379 = vmatprep.subr.mxu0 0.0
      %380 = vmatpush1.msra.mxu0 0.0
      %381 = vmatprep.subr.mxu0 0.0
      %382 = vmatpush1.msra.mxu0 0.0
      %383 = vmatprep.subr.mxu0 0.0
      %384 = vmatpush1.msra.mxu0 0.0
      %385 = vmatprep.subr.mxu0 0.0
      %386 = vmatpush1.msra.mxu0 0.0
      %387 = vmatprep.subr.mxu0 0.0
      %388 = vmatpush1.msra.mxu0 0.0
      %389 = vmatprep.subr.mxu0 0.0
      %390 = vmatpush1.msra.mxu0 0.0
      %391 = vmatprep.subr.mxu0 0.0
      %392 = vmatpush1.msra.mxu0 0.0
      %393 = vmatprep.subr.mxu0 0.0
      %394 = vmatpush1.msra.mxu0 0.0
      %395 = vmatprep.subr.mxu0 0.0
      %396 = vmatpush1.msra.mxu0 0.0
      %397 = vmatprep.subr.mxu0 0.0
      %398 = vmatpush1.msra.mxu0 0.0
      %399 = vmatprep.subr.mxu0 0.0
      %400 = vmatpush1.msra.mxu0 0.0
      %401 = vmatprep.subr.mxu0 0.0
      %402 = vmatpush1.msra.mxu0 0.0
      %403 = vmatprep.subr.mxu0 0.0
      %404 = vmatpush1.msra.mxu0 0.0
      %405 = vmatprep.subr.mxu0 0.0
      %406 = vmatpush1.msra.mxu0 0.0
      %407 = vmatprep.subr.mxu0 0.0
      %408 = vmatpush1.msra.mxu0 0.0
      %409 = vmatprep.subr.mxu0 0.0
      %410 = vmatpush1.msra.mxu0 0.0
      %411 = vmatprep.subr.mxu0 0.0
      %412 = vmatpush1.msra.mxu0 0.0
      %413 = vmatprep.mubr.f32.mxu0 0.0
      %414 = vmatmul.mubr.f32.gmra.mrb[0].mxu0 %v347
      %v415 = vpop.f32.mrb[0].mxu0
      %v416 = vadd.f32 %v282, %v415
      %v417 = vpop.f32.mrb[0].mxu0
      %418 = vdwg.mxu0
      %v419 = vmax.f32 %v416, 0.0
      %v420 = vld [vmem:[%s3] sm:$0xff]
      %v421 = vld [vmem:[%s4] sm:$0x1]
      %vm422 = vcmask 64512
      %v424 = vsel %vm422, %v419, 0
      %426 = vmatprep.subr.mxu0 0.0
      %427 = vmatpush1.msra.mxu0 %v420
      %428 = vmatprep.subr.mxu0 0.0
      %429 = vmatpush1.msra.mxu0 0.0
      %430 = vmatprep.subr.mxu0 0.0
      %431 = vmatpush1.msra.mxu0 0.0
      %432 = vmatprep.subr.mxu0 0.0
      %433 = vmatpush1.msra.mxu0 0.0
      %434 = vmatprep.subr.mxu0 0.0
      %435 = vmatpush1.msra.mxu0 0.0
      %436 = vmatprep.subr.mxu0 0.0
      %437 = vmatpush1.msra.mxu0 0.0
      %438 = vmatprep.subr.mxu0 0.0
      %439 = vmatpush1.msra.mxu0 0.0
      %440 = vmatprep.subr.mxu0 0.0
      %441 = vmatpush1.msra.mxu0 0.0
      %442 = vmatprep.subr.mxu0 0.0
      %443 = vmatpush1.msra.mxu0 0.0
      %444 = vmatprep.subr.mxu0 0.0
      %445 = vmatpush1.msra.mxu0 0.0
      %446 = vmatprep.subr.mxu0 0.0
      %447 = vmatpush1.msra.mxu0 0.0
      %448 = vmatprep.subr.mxu0 0.0
      %449 = vmatpush1.msra.mxu0 0.0
      %450 = vmatprep.subr.mxu0 0.0
      %451 = vmatpush1.msra.mxu0 0.0
      %452 = vmatprep.subr.mxu0 0.0
      %453 = vmatpush1.msra.mxu0 0.0
      %454 = vmatprep.subr.mxu0 0.0
      %455 = vmatpush1.msra.mxu0 0.0
      %456 = vmatprep.subr.mxu0 0.0
      %457 = vmatpush1.msra.mxu0 0.0
      %458 = vmatprep.subr.mxu0 0.0
      %459 = vmatpush1.msra.mxu0 0.0
      %460 = vmatprep.subr.mxu0 0.0
      %461 = vmatpush1.msra.mxu0 0.0
      %462 = vmatprep.subr.mxu0 0.0
      %463 = vmatpush1.msra.mxu0 0.0
      %464 = vmatprep.subr.mxu0 0.0
      %465 = vmatpush1.msra.mxu0 0.0
      %466 = vmatprep.subr.mxu0 0.0
      %467 = vmatpush1.msra.mxu0 0.0
      %468 = vmatprep.subr.mxu0 0.0
      %469 = vmatpush1.msra.mxu0 0.0
      %470 = vmatprep.subr.mxu0 0.0
      %471 = vmatpush1.msra.mxu0 0.0
      %472 = vmatprep.subr.mxu0 0.0
      %473 = vmatpush1.msra.mxu0 0.0
      %474 = vmatprep.subr.mxu0 0.0
      %475 = vmatpush1.msra.mxu0 0.0
      %476 = vmatprep.subr.mxu0 0.0
      %477 = vmatpush1.msra.mxu0 0.0
      %478 = vmatprep.subr.mxu0 0.0
      %479 = vmatpush1.msra.mxu0 0.0
      %480 = vmatprep.subr.mxu0 0.0
      %481 = vmatpush1.msra.mxu0 0.0
      %482 = vmatprep.subr.mxu0 0.0
      %483 = vmatpush1.msra.mxu0 0.0
      %484 = vmatprep.subr.mxu0 0.0
      %485 = vmatpush1.msra.mxu0 0.0
      %486 = vmatprep.subr.mxu0 0.0
      %487 = vmatpush1.msra.mxu0 0.0
      %488 = vmatprep.subr.mxu0 0.0
      %489 = vmatpush1.msra.mxu0 0.0
      %490 = vmatprep.mubr.f32.mxu0 0.0
      %491 = vmatmul.mubr.f32.gmra.mrb[0].mxu0 %v424
      %v492 = vpop.f32.mrb[0].mxu0
      %v493 = vadd.f32 %v421, %v492
      %v494 = vpop.f32.mrb[0].mxu0
      %495 = vdwg.mxu0
      %v496 = vxor.u32 %v493, 2147483648
      %v497 = vmul.f32 %v496, 1.442695
      %v498 = vpow.pop %v497
      %v499 = vadd.f32 %v498, 1.0
      %v500 = vrcp.pop %v499
      %v501 = vmul.f32 1.0, %v500
      %v502 = vlaneseq
      %v503 = vshrl.u32 %v502, 7
      %v504 = vsub.s32 0, %v503
      %v505 = vrot.slane %v501, %v504
      %507 = vbcast.lane.b32.xlu0 %v505, 256
      %v508 = vpop.permute.xlu0 %507
      %s510 = sor.u32 256, 8
      %511 = vbcast.lane.b32.xlu0 %v505, %s510
      %v512 = vpop.permute.xlu0 %511
      %s514 = sor.u32 256, 16
      %515 = vbcast.lane.b32.xlu0 %v505, %s514
      %v516 = vpop.permute.xlu0 %515
      %s518 = sor.u32 256, 24
      %519 = vbcast.lane.b32.xlu0 %v505, %s518
      %v520 = vpop.permute.xlu0 %519
      %s522 = sor.u32 256, 32
      %523 = vbcast.lane.b32.xlu0 %v505, %s522
      %v524 = vpop.permute.xlu0 %523
      %s526 = sor.u32 256, 40
      %527 = vbcast.lane.b32.xlu0 %v505, %s526
      %v528 = vpop.permute.xlu0 %527
      %s530 = sor.u32 256, 48
      %531 = vbcast.lane.b32.xlu0 %v505, %s530
      %v532 = vpop.permute.xlu0 %531
      %s534 = sor.u32 256, 56
      %535 = vbcast.lane.b32.xlu0 %v505, %s534
      %v536 = vpop.permute.xlu0 %535
      %v537 = vmul.f32 %v225, %v508
      %v538 = vmul.f32 %v226, %v508
      %v539 = vmul.f32 %v227, %v512
      %v540 = vmul.f32 %v228, %v512
      %v541 = vmul.f32 %v229, %v516
      %v542 = vmul.f32 %v230, %v516
      %v543 = vmul.f32 %v231, %v520
      %v544 = vmul.f32 %v232, %v520
      %v545 = vmul.f32 %v233, %v524
      %v546 = vmul.f32 %v234, %v524
      %v547 = vmul.f32 %v235, %v528
      %v548 = vmul.f32 %v236, %v528
      %v549 = vmul.f32 %v237, %v532
      %v550 = vmul.f32 %v238, %v532
      %v551 = vmul.f32 %v239, %v536
      %v552 = vmul.f32 %v240, %v536
      %553 = vst [vmem:[%s224] sm:$0xff] %v537
      %554 = vst [vmem:[%s224 + $0x8] sm:$0xff] %v538
      %555 = vst [vmem:[%s224 + $0x10] sm:$0xff] %v539
      %556 = vst [vmem:[%s224 + $0x18] sm:$0xff] %v540
      %557 = vst [vmem:[%s224 + $0x20] sm:$0xff] %v541
      %558 = vst [vmem:[%s224 + $0x28] sm:$0xff] %v542
      %559 = vst [vmem:[%s224 + $0x30] sm:$0xff] %v543
      %560 = vst [vmem:[%s224 + $0x38] sm:$0xff] %v544
      %561 = vst [vmem:[%s224 + $0x40] sm:$0xff] %v545
      %562 = vst [vmem:[%s224 + $0x48] sm:$0xff] %v546
      %563 = vst [vmem:[%s224 + $0x50] sm:$0xff] %v547
      %564 = vst [vmem:[%s224 + $0x58] sm:$0xff] %v548
      %565 = vst [vmem:[%s224 + $0x60] sm:$0xff] %v549
      %566 = vst [vmem:[%s224 + $0x68] sm:$0xff] %v550
      %567 = vst [vmem:[%s224 + $0x70] sm:$0xff] %v551
      %568 = vst [vmem:[%s224 + $0x78] sm:$0xff] %v552
      %p569 = scmp.lt.s32.totalorder %s16, 1
      %s570 = scalar_select %p569, %s16, 1
      %s571 = smul.addr %s570, 16
      %s572 = smul.addr %s571, 8
      %s573 = scalar_lea.vmem %s5, %s572
      // Predicated region
      $region41: #{channel_gate.1} parent=39 // pred_check
        %p574 = pneg %p144
      $region42: #{channel_gate.1} parent=39 // pred_check_branch
        %576 = sbr.rel (%p574) target = $region44
      $region43: #{channel_gate.1} parent=39 // pred_region
        _
      $region44: #{channel_gate.1} parent=39 // pred_fallthru
        _
    $region40: #{channel_gate.1} parent=5 // pred_fallthru
      _
    %p577 = scmp.le.s32.totalorder 2, %s11
    // Predicated region
    $region45: #{channel_gate.1} parent=5 // pred_check
      %p578 = pneg %p577
    $region46: #{channel_gate.1} parent=5 // pred_check_branch
      %580 = sbr.rel (%p578) target = $region48
    $region47: #{channel_gate.1} parent=5 // pred_region
      %s581 = ssub.s32 %s11, 2
      // Predicated region
      $region49: #{channel_gate.1} parent=47 // pred_check
        %p582 = pneg %p150
      $region50: #{channel_gate.1} parent=47 // pred_check_branch
        %584 = sbr.rel (%p582) target = $region52
      $region51: #{channel_gate.1} parent=47 // pred_region
        %p585 = scmp.lt.s32.totalorder %s17, 1
        %s586 = scalar_select %p585, %s17, 1
        %s587 = smul.addr %s586, 16
        %s588 = smul.addr %s587, 8
        %s589 = scalar_lea.vmem %s5, %s588
      $region52: #{channel_gate.1} parent=47 // pred_fallthru
        _
    $region48: #{channel_gate.1} parent=5 // pred_fallthru
      _
  $region6: #{channel_gate.1} parent=0 // loop_footer
    %s15 = sadd.s32 1, %s11
  $region7: #{channel_gate.1} parent=0 // loop_footer_branch
    %10 = sbr.rel target = $region3
  $region8: #{channel_gate.1} parent=0 // loop_exit
    _

</llo_original>
